<compile_context>
chip_gen: v7x
topology: tpu7x:2x2x1
jax: 0.10.0
libtpu: 0.0.40
codegen_flags: <defaults>
</compile_context>

<pallas_src>
import jax
import jax.numpy as jnp
from jax.experimental import pallas as pl
from jax.experimental.pallas import tpu as pltpu

VOCAB_SIZE = 64
EMBEDDING_DIM = 16
CONTEXT_SIZE = 4
HIDDEN = 128


def _round_up(x, m):
    return ((x + m - 1) // m) * m


def ngram_kernel(idx_ref, lane_ref, t_ref, b1_ref, w2_ref, b2_ref, out_ref):
    # idx_ref : VMEM (TM, C)      int32 token ids with +i*V position offsets pre-added
    # lane_ref: VMEM (1, C*V)     int32 lane iota 0..C*V-1 (grid-invariant)
    # t_ref   : VMEM (C*V, H)     bf16  folded embedding @ W1 table
    # b1_ref  : VMEM (1, H)       f32
    # w2_ref  : VMEM (H, VPAD)    bf16  vocab lane-padded to 128
    # b2_ref  : VMEM (1, VPAD)    f32
    # out_ref : VMEM (TM, VPAD)   f32
    ids = idx_ref[...]                          # (TM, C)
    lane = lane_ref[...]                        # (1, C*V)
    c = ids.shape[1]

    # Multi-hot selector.  Per-position lane ranges [i*V, (i+1)*V) are
    # disjoint, so a logical-OR chain of compares is exact (and cheaper than
    # per-position float converts + adds).  Out-of-range ids match no lane.
    hot = lane == ids[:, 0:1]                   # (TM, C*V) bool via broadcast
    for i in range(1, c):                       # static unroll over context
        hot = jnp.logical_or(hot, lane == ids[:, i:i + 1])
    sel = hot.astype(jnp.float32).astype(jnp.bfloat16)   # exact 0/1 in bf16

    # Layer 1 (embedding gather fused into the matmul): h = relu(sel @ T + b1)
    h = jnp.dot(sel, t_ref[...], preferred_element_type=jnp.float32)
    h = jnp.maximum(h + b1_ref[...], 0.0)       # f32 VPU work (v5e-friendly)

    # Layer 2 (lane-padded vocab output), bf16 operands, f32 accumulate.
    out_ref[...] = (
        jnp.dot(h.astype(jnp.bfloat16), w2_ref[...],
                preferred_element_type=jnp.float32)
        + b2_ref[...]
    )


def prepare_ngram_params(emb_table, w1, b1, w2, b2):
    """One-time weight preprocessing (plain XLA).  Call once, reuse per step.

    emb_table: (V, D) f32
    w1: (C*D, H) f32   (already transposed vs. torch Linear.weight)
    b1: (1, H)   f32
    w2: (H, V)   f32   (already transposed vs. torch Linear.weight)
    b2: (1, V)   f32
    """
    V, D = emb_table.shape
    CD, H = w1.shape
    C = CD // D
    VPAD = max(128, pl.cdiv(V, 128) * 128)      # lane-dense output / MXU N fill

    # T[i*V + v, :] = emb_table[v] @ W1[i*D:(i+1)*D, :]
    t = jnp.einsum(
        "vd,cdh->cvh",
        emb_table.astype(jnp.float32),
        w1.astype(jnp.float32).reshape(C, D, H),
    ).reshape(C * V, H).astype(jnp.bfloat16)

    w2p = jnp.zeros((H, VPAD), jnp.bfloat16).at[:, :V].set(w2.astype(jnp.bfloat16))
    b2p = jnp.zeros((1, VPAD), jnp.float32).at[:, :V].set(
        b2.reshape(1, V).astype(jnp.float32))
    b1r = b1.reshape(1, H).astype(jnp.float32)
    lane = jnp.arange(C * V, dtype=jnp.int32).reshape(1, C * V)
    pos_off = (jnp.arange(C, dtype=jnp.int32) * V).reshape(1, C)

    return dict(t=t, b1=b1r, w2=w2p, b2=b2p, lane=lane, pos_off=pos_off,
                vocab=V, context=C, hidden=H, vpad=VPAD)


def ngram_forward_prepared(token_ids, params, *, batch_tile=512,
                           return_padded=False):
    """Forward with prepared params.

    token_ids: (C,) int -> returns (1, vocab)  [exact module semantics], or
               (B, C) int -> returns (B, vocab).
    With return_padded=True the raw lane/row-padded (Bp, 128) f32 kernel
    output is returned (skips an extra HBM round trip at large B); rows >= B
    and lanes >= vocab are padding.
    """
    single = token_ids.ndim == 1
    ids = (token_ids.reshape(1, -1) if single else token_ids).astype(jnp.int32)
    B, C = ids.shape
    V, VPAD, H = params["vocab"], params["vpad"], params["hidden"]
    CV = C * V

    # Pre-add per-position lane offsets (saves 4 in-kernel adds per step).
    ids = ids + params["pos_off"]

    # ---- batch tile selection ----
    tm = max(8, (min(int(batch_tile), 1024) // 8) * 8)      # enforce tm % 8 == 0
    if B <= tm:
        # Latency path: shrink the tile so pad waste is small; for B > 8 make
        # the grid >= 2 steps so both v7x TensorCores get work.
        tm = 8 if B <= 8 else min(tm, _round_up(pl.cdiv(B, 2), 8))
    Bp = _round_up(B, tm)
    ids_p = jnp.pad(ids, ((0, Bp - B), (0, 0)))   # pad rows are discarded

    out_p = pl.pallas_call(
        ngram_kernel,
        out_shape=jax.ShapeDtypeStruct((Bp, VPAD), jnp.float32),
        grid_spec=pltpu.PrefetchScalarGridSpec(
            num_scalar_prefetch=0,
            grid=(Bp // tm,),
            in_specs=[
                pl.BlockSpec((tm, C), lambda i: (i, 0)),        # token ids
                # Grid-invariant inputs: DMA'd once, VMEM-resident.
                pl.BlockSpec((1, CV), lambda i: (0, 0)),        # lane iota
                pl.BlockSpec((CV, H), lambda i: (0, 0)),        # folded table (bf16)
                pl.BlockSpec((1, H), lambda i: (0, 0)),         # b1
                pl.BlockSpec((H, VPAD), lambda i: (0, 0)),      # w2 padded (bf16)
                pl.BlockSpec((1, VPAD), lambda i: (0, 0)),      # b2 padded
            ],
            out_specs=pl.BlockSpec((tm, VPAD), lambda i: (i, 0)),
        ),
        compiler_params=pltpu.CompilerParams(
            dimension_semantics=("parallel",)),                 # megacore on v7x
    )(ids_p, params["lane"], params["t"], params["b1"], params["w2"],
      params["b2"])

    if return_padded:
        return out_p
    return out_p[:B, :V]


def ngram_forward(token_ids, emb_table, w1, b1, w2, b2, *, batch_tile=512):
    """Convenience wrapper (prep + forward). Prefer prepare_ngram_params()
    once + ngram_forward_prepared() per call."""
    params = prepare_ngram_params(emb_table, w1, b1, w2, b2)
    return ngram_forward_prepared(token_ids, params, batch_tile=batch_tile)


def ngram_reference(token_ids, emb_table, w1, b1, w2, b2):
    ids = token_ids.reshape(-1, CONTEXT_SIZE)
    embeds = emb_table[ids].reshape(ids.shape[0], -1)        # (B, C*D)
    h = jnp.maximum(embeds @ w1 + b1, 0.0)                   # (B, 128)
    return h @ w2 + b2                                       # (B, vocab)


if __name__ == "__main__":
    key = jax.random.PRNGKey(0)
    k_emb, k_w1, k_b1, k_w2, k_b2, k_idx = jax.random.split(key, 6)

    # Deterministic synthetic parameters (shapes from module __init__).
    emb_table = jax.random.normal(k_emb, (VOCAB_SIZE, EMBEDDING_DIM), jnp.float32) * 0.1
    w1 = jax.random.normal(k_w1, (CONTEXT_SIZE * EMBEDDING_DIM, HIDDEN), jnp.float32) * 0.1
    b1 = jax.random.normal(k_b1, (1, HIDDEN), jnp.float32) * 0.1
    w2 = jax.random.normal(k_w2, (HIDDEN, VOCAB_SIZE), jnp.float32) * 0.1
    b2 = jax.random.normal(k_b2, (1, VOCAB_SIZE), jnp.float32) * 0.1

    # Small batch of contexts (each row is one "inputs" of the torch module).
    BATCH = 20   # exercises the adaptive tile + 2-step (dual-TC) grid path
    token_ids = jax.random.randint(
        k_idx, (BATCH, CONTEXT_SIZE), 0, VOCAB_SIZE, jnp.int32)

    # One-time weight folding, reused across calls.
    params = prepare_ngram_params(emb_table, w1, b1, w2, b2)

    out = jax.block_until_ready(ngram_forward_prepared(token_ids, params))
    ref = ngram_reference(token_ids, emb_table, w1, b1, w2, b2)
    assert out.shape == (BATCH, VOCAB_SIZE), out.shape
    # bf16 MXU operands (f32 accumulate) -> looser tolerance than pure f32.
    assert jnp.allclose(out, ref, atol=2e-2, rtol=2e-2), "mismatch vs reference"

    # Single-context path (exact module semantics: returns (1, vocab)).
    out1 = jax.block_until_ready(ngram_forward_prepared(token_ids[0], params))
    assert out1.shape == (1, VOCAB_SIZE), out1.shape
    assert jnp.allclose(out1, ref[0:1], atol=2e-2, rtol=2e-2), "single-row mismatch"

    print("KERNEL_OK")
</pallas_src>

<mosaic_0001>
module attributes {stable_mosaic.version = 11 : i64} {
  func.func @ngram_kernel(%arg0: i32, %arg1: memref<16x4xi32, #tpu.memory_space<vmem>>, %arg2: memref<1x256xi32, #tpu.memory_space<vmem>>, %arg3: memref<256x128xbf16, #tpu.memory_space<vmem>>, %arg4: memref<1x128xf32, #tpu.memory_space<vmem>>, %arg5: memref<128x128xbf16, #tpu.memory_space<vmem>>, %arg6: memref<1x128xf32, #tpu.memory_space<vmem>>, %arg7: memref<16x128xf32, #tpu.memory_space<vmem>>) attributes {dimension_semantics = [#tpu.dimension_semantics<parallel>], iteration_bounds = array<i64: 2>, scalar_prefetch = 0 : i64, scratch_operands = 0 : i64, tpu.core_type = #tpu.core_type<tc>, window_params = [{transform_indices = @transform_0, window_bounds = array<i64: 16, 4>}, {pipeline_mode = #tpu.pipeline_mode<synchronous>, transform_indices = @transform_1, window_bounds = array<i64: 1, 256>}, {pipeline_mode = #tpu.pipeline_mode<synchronous>, transform_indices = @transform_2, window_bounds = array<i64: 256, 128>}, {pipeline_mode = #tpu.pipeline_mode<synchronous>, transform_indices = @transform_3, window_bounds = array<i64: 1, 128>}, {pipeline_mode = #tpu.pipeline_mode<synchronous>, transform_indices = @transform_4, window_bounds = array<i64: 128, 128>}, {pipeline_mode = #tpu.pipeline_mode<synchronous>, transform_indices = @transform_5, window_bounds = array<i64: 1, 128>}, {transform_indices = @transform_6, window_bounds = array<i64: 16, 128>}]} {
    %c0 = arith.constant 0 : index
    %c0_0 = arith.constant 0 : index
    %0 = vector.load %arg1[%c0, %c0_0] : memref<16x4xi32, #tpu.memory_space<vmem>>, vector<16x4xi32>
    %c0_1 = arith.constant 0 : index
    %c0_2 = arith.constant 0 : index
    %1 = vector.load %arg2[%c0_1, %c0_2] : memref<1x256xi32, #tpu.memory_space<vmem>>, vector<1x256xi32>
    %2 = vector.extract_strided_slice %0 {offsets = [0, 0], sizes = [16, 1], strides = [1, 1]} : vector<16x4xi32> to vector<16x1xi32>
    %3 = vector.broadcast %1 : vector<1x256xi32> to vector<16x256xi32>
    %4 = vector.broadcast %2 : vector<16x1xi32> to vector<16x256xi32>
    %5 = arith.cmpi eq, %3, %4 : vector<16x256xi32>
    %6 = vector.extract_strided_slice %0 {offsets = [0, 1], sizes = [16, 1], strides = [1, 1]} : vector<16x4xi32> to vector<16x1xi32>
    %7 = vector.broadcast %1 : vector<1x256xi32> to vector<16x256xi32>
    %8 = vector.broadcast %6 : vector<16x1xi32> to vector<16x256xi32>
    %9 = arith.cmpi eq, %7, %8 : vector<16x256xi32>
    %10 = arith.ori %5, %9 : vector<16x256xi1>
    %11 = vector.extract_strided_slice %0 {offsets = [0, 2], sizes = [16, 1], strides = [1, 1]} : vector<16x4xi32> to vector<16x1xi32>
    %12 = vector.broadcast %1 : vector<1x256xi32> to vector<16x256xi32>
    %13 = vector.broadcast %11 : vector<16x1xi32> to vector<16x256xi32>
    %14 = arith.cmpi eq, %12, %13 : vector<16x256xi32>
    %15 = arith.ori %10, %14 : vector<16x256xi1>
    %16 = vector.extract_strided_slice %0 {offsets = [0, 3], sizes = [16, 1], strides = [1, 1]} : vector<16x4xi32> to vector<16x1xi32>
    %17 = vector.broadcast %1 : vector<1x256xi32> to vector<16x256xi32>
    %18 = vector.broadcast %16 : vector<16x1xi32> to vector<16x256xi32>
    %19 = arith.cmpi eq, %17, %18 : vector<16x256xi32>
    %20 = arith.ori %15, %19 : vector<16x256xi1>
    %21 = arith.extui %20 : vector<16x256xi1> to vector<16x256xi32>
    %22 = arith.sitofp %21 : vector<16x256xi32> to vector<16x256xf32>
    %23 = arith.truncf %22 : vector<16x256xf32> to vector<16x256xbf16>
    %c0_3 = arith.constant 0 : index
    %c0_4 = arith.constant 0 : index
    %24 = vector.load %arg3[%c0_3, %c0_4] : memref<256x128xbf16, #tpu.memory_space<vmem>>, vector<256x128xbf16>
    %cst = arith.constant dense<0.000000e+00> : vector<16x128xf32>
    %25 = tpu.matmul %23, %24, %cst {dimension_numbers = #tpu.dot_dimension_numbers<[1], [0], [0], [1], [0, 0, 1, 1], [], []>} : vector<16x256xbf16>, vector<256x128xbf16>, vector<16x128xf32> -> vector<16x128xf32>
    %c0_5 = arith.constant 0 : index
    %c0_6 = arith.constant 0 : index
    %26 = vector.load %arg4[%c0_5, %c0_6] : memref<1x128xf32, #tpu.memory_space<vmem>>, vector<1x128xf32>
    %27 = vector.broadcast %26 : vector<1x128xf32> to vector<16x128xf32>
    %28 = arith.addf %25, %27 : vector<16x128xf32>
    %cst_7 = arith.constant 0.000000e+00 : f32
    %29 = vector.broadcast %cst_7 : f32 to vector<16x128xf32>
    %30 = arith.maximumf %28, %29 : vector<16x128xf32>
    %31 = arith.truncf %30 : vector<16x128xf32> to vector<16x128xbf16>
    %c0_8 = arith.constant 0 : index
    %c0_9 = arith.constant 0 : index
    %32 = vector.load %arg5[%c0_8, %c0_9] : memref<128x128xbf16, #tpu.memory_space<vmem>>, vector<128x128xbf16>
    %cst_10 = arith.constant dense<0.000000e+00> : vector<16x128xf32>
    %33 = tpu.matmul %31, %32, %cst_10 {dimension_numbers = #tpu.dot_dimension_numbers<[1], [0], [0], [1], [0, 0, 1, 1], [], []>} : vector<16x128xbf16>, vector<128x128xbf16>, vector<16x128xf32> -> vector<16x128xf32>
    %c0_11 = arith.constant 0 : index
    %c0_12 = arith.constant 0 : index
    %34 = vector.load %arg6[%c0_11, %c0_12] : memref<1x128xf32, #tpu.memory_space<vmem>>, vector<1x128xf32>
    %35 = vector.broadcast %34 : vector<1x128xf32> to vector<16x128xf32>
    %36 = arith.addf %33, %35 : vector<16x128xf32>
    %c0_13 = arith.constant 0 : index
    %c0_14 = arith.constant 0 : index
    %37 = vector.load %arg7[%c0_13, %c0_14] : memref<16x128xf32, #tpu.memory_space<vmem>>, vector<16x128xf32>
    tpu.vector_store %arg7[%c0_13, %c0_14], %36 {strides = array<i32>} : memref<16x128xf32, #tpu.memory_space<vmem>>, vector<16x128xf32>,
    return
  }
  func.func @transform_0(%arg0: i32) -> (i32, i32) {
    %c0_i32 = arith.constant 0 : i32
    %c0_i32_0 = arith.constant 0 : i32
    return %arg0, %c0_i32 : i32, i32
  }
  func.func @transform_1(%arg0: i32) -> (i32, i32) {
    %c0_i32 = arith.constant 0 : i32
    %c0_i32_0 = arith.constant 0 : i32
    %c0_i32_1 = arith.constant 0 : i32
    return %c0_i32, %c0_i32_0 : i32, i32
  }
  func.func @transform_2(%arg0: i32) -> (i32, i32) {
    %c0_i32 = arith.constant 0 : i32
    %c0_i32_0 = arith.constant 0 : i32
    %c0_i32_1 = arith.constant 0 : i32
    return %c0_i32, %c0_i32_0 : i32, i32
  }
  func.func @transform_3(%arg0: i32) -> (i32, i32) {
    %c0_i32 = arith.constant 0 : i32
    %c0_i32_0 = arith.constant 0 : i32
    %c0_i32_1 = arith.constant 0 : i32
    return %c0_i32, %c0_i32_0 : i32, i32
  }
  func.func @transform_4(%arg0: i32) -> (i32, i32) {
    %c0_i32 = arith.constant 0 : i32
    %c0_i32_0 = arith.constant 0 : i32
    %c0_i32_1 = arith.constant 0 : i32
    return %c0_i32, %c0_i32_0 : i32, i32
  }
  func.func @transform_5(%arg0: i32) -> (i32, i32) {
    %c0_i32 = arith.constant 0 : i32
    %c0_i32_0 = arith.constant 0 : i32
    %c0_i32_1 = arith.constant 0 : i32
    return %c0_i32, %c0_i32_0 : i32, i32
  }
  func.func @transform_6(%arg0: i32) -> (i32, i32) {
    %c0_i32 = arith.constant 0 : i32
    %c0_i32_0 = arith.constant 0 : i32
    return %arg0, %c0_i32 : i32, i32
  }
}

</mosaic_0001>

<llo_original>
// kernel: tpu_custom_call.1
$region0: #{tpu_custom_call.1}
  #allocation0 [shape = 'u32[]', space=smem, size = 0x4, offset = 0x4, fixed_abs, tag = 'smem constant byte address 0x4 - core index']
  #allocation1 [shape = 'u32[144,128]{1,0:T(1,128)}', space=vmem, size = 0x12000, scoped, tag = 'internal scratch']
  %s0 = inlined_call_operand.vmem [shape: s32[32,4], index: 0, kind: input, shape index: {}]
  %s1 = inlined_call_operand.vmem [shape: s32[1,256], index: 1, kind: input, shape index: {}]
  %s2 = inlined_call_operand.hbm [shape: bf16[256,128], index: 2, kind: input, shape index: {}]
  %s3 = inlined_call_operand.vmem [shape: f32[1,128], index: 3, kind: input, shape index: {}]
  %s4 = inlined_call_operand.hbm [shape: bf16[128,128], index: 4, kind: input, shape index: {}]
  %s5 = inlined_call_operand.vmem [shape: f32[1,128], index: 5, kind: input, shape index: {}]
  %s6 = inlined_call_operand.hbm [shape: f32[32,128], index: 6, kind: output, shape index: {}]
  %s7 = sld [smem:[#allocation0]]
  $region65: #{tpu_custom_call.1} parent=0
    _
  %s9 = ssub.s32 1, %s7
  %s10 = scalar_select 0, %s9, %s7
  $region1: #{tpu_custom_call.1} parent=0
    #allocation2 [shape = 'u8[65536]{0}', space=vmem, size = 0x10000, scoped, tag = 'input window, operand 2, single buffered']
    #allocation3 [shape = 's32[2]{0}', space=sflag, size = 0x8, scoped, tag = 'scoped memory for tpu_custom_call.1']
    #allocation4 [shape = 's32[2]{0}', space=sflag, size = 0x8, scoped, tag = 'scoped memory for tpu_custom_call.1']
    #allocation5 [shape = 'u8[32768]{0}', space=vmem, size = 0x8000, scoped, tag = 'input window, operand 4, single buffered']
    #allocation6 [shape = 's32[1]{0}', space=sflag, size = 0x4, scoped, tag = 'scoped memory for tpu_custom_call.1']
    #allocation7 [shape = 'u8[16384]{0}', space=vmem, size = 0x4000, scoped, tag = 'output window, operand 0']
    %11 = vsyncpa [#allocation3], 0
    %12 = vsyncpa [#allocation6], 0
    %13 = vsyncpa [#allocation4], 0
    %s14 = scalar_lea.sflag [#allocation4], 1
    %15 = vsyncpa %s14, 0
    loop: start=0, step=1, limit=4
    $region2: #{tpu_custom_call.1} parent=1 // loop_pre_header
      _
    $region3: #{tpu_custom_call.1} parent=1 // loop_header
      %s17 = sphi 0, %s21
      %p18 = scmp.ge.s32.totalorder %s17, 4
      %s27 = sphi 0, %s29
      %s30 = sphi 0, %s27
      %s31 = sphi 0, %s30
      %s47 = sphi 0, %s31
      %s51 = sphi 0, %s51
      %s53 = sphi 0, %s51
      %s54 = sphi 0, %s53
      %s68 = sphi 0, %s54
      %s72 = sphi 0, %s72
      %s74 = sphi 0, %s72
      %s75 = sphi 0, %s74
      %s89 = sphi 0, %s75
      %s93 = sphi 0, %s93
      %s95 = sphi 0, %s93
      %s96 = sphi 0, %s95
      %s110 = sphi 0, %s96
      %s114 = sphi 0, %s114
      %s116 = sphi 0, %s114
      %s117 = sphi 0, %s116
      %s131 = sphi 0, %s117
      %s135 = sphi 0, %s135
      %s137 = sphi 0, %s135
      %s138 = sphi 0, %s137
      %s152 = sphi 0, %s138
      %s158 = sphi 0, %s160
      %s161 = sphi 0, %s158
      %s162 = sphi 0, %s161
      %s178 = sphi 0, %s162
    $region4: #{tpu_custom_call.1} parent=1 // loop_header_branch
      %20 = sbr.rel (%p18) target = $region8
    $region5: #{tpu_custom_call.1} parent=1 // loop_body
      %s22 = ssub.s32 %s17, 1
      %s23 = ssub.s32 %s17, 2
      %s24 = sadd.s32 %s17, 1
      %s25 = ssub.s32 %s17, %s24
      %p26 = scmp.eq.s32.totalorder %s25, 0
      %s28 = sadd.s32 %s27, 1
      %s29 = scalar_select %p26, %s27, %s28
      %p32 = pneg %p26
      %p33 = scmp.eq.s32.totalorder %s17, 1
      %p34 = por %p32, %p33
      %p35 = scmp.ne.s32.totalorder %s27, %s30
      %p36 = scmp.eq.s32.totalorder %s17, 0
      %p37 = por %p35, %p36
      %p38 = scmp.ne.s32.totalorder %s27, %s30
      %p39 = scmp.eq.s32.totalorder %s22, 1
      %p40 = por %p38, %p39
      %p41 = scmp.ne.s32.totalorder %s30, %s31
      %p42 = scmp.eq.s32.totalorder %s22, 0
      %p43 = por %p41, %p42
      %p44 = scmp.ne.s32.totalorder %s30, %s31
      %p45 = scmp.eq.s32.totalorder %s23, 1
      %p46 = por %p44, %p45
      %p48 = scmp.ne.s32.totalorder %s31, %s47
      %p49 = scmp.eq.s32.totalorder %s23, 0
      %p50 = por %p48, %p49
      %s52 = sadd.s32 %s51, 1
      %p55 = scmp.eq.s32.totalorder %s17, 1
      %p56 = scmp.ne.s32.totalorder %s51, %s53
      %p57 = scmp.eq.s32.totalorder %s17, 0
      %p58 = por %p56, %p57
      %p59 = scmp.ne.s32.totalorder %s51, %s53
      %p60 = scmp.eq.s32.totalorder %s22, 1
      %p61 = por %p59, %p60
      %p62 = scmp.ne.s32.totalorder %s53, %s54
      %p63 = scmp.eq.s32.totalorder %s22, 0
      %p64 = por %p62, %p63
      %p65 = scmp.ne.s32.totalorder %s53, %s54
      %p66 = scmp.eq.s32.totalorder %s23, 1
      %p67 = por %p65, %p66
      %p69 = scmp.ne.s32.totalorder %s54, %s68
      %p70 = scmp.eq.s32.totalorder %s23, 0
      %p71 = por %p69, %p70
      %s73 = sadd.s32 %s72, 1
      %p76 = scmp.eq.s32.totalorder %s17, 1
      %p77 = scmp.ne.s32.totalorder %s72, %s74
      %p78 = scmp.eq.s32.totalorder %s17, 0
      %p79 = por %p77, %p78
      %p80 = scmp.ne.s32.totalorder %s72, %s74
      %p81 = scmp.eq.s32.totalorder %s22, 1
      %p82 = por %p80, %p81
      %p83 = scmp.ne.s32.totalorder %s74, %s75
      %p84 = scmp.eq.s32.totalorder %s22, 0
      %p85 = por %p83, %p84
      %p86 = scmp.ne.s32.totalorder %s74, %s75
      %p87 = scmp.eq.s32.totalorder %s23, 1
      %p88 = por %p86, %p87
      %p90 = scmp.ne.s32.totalorder %s75, %s89
      %p91 = scmp.eq.s32.totalorder %s23, 0
      %p92 = por %p90, %p91
      %s94 = sadd.s32 %s93, 1
      %p97 = scmp.eq.s32.totalorder %s17, 1
      %p98 = scmp.ne.s32.totalorder %s93, %s95
      %p99 = scmp.eq.s32.totalorder %s17, 0
      %p100 = por %p98, %p99
      %p101 = scmp.ne.s32.totalorder %s93, %s95
      %p102 = scmp.eq.s32.totalorder %s22, 1
      %p103 = por %p101, %p102
      %p104 = scmp.ne.s32.totalorder %s95, %s96
      %p105 = scmp.eq.s32.totalorder %s22, 0
      %p106 = por %p104, %p105
      %p107 = scmp.ne.s32.totalorder %s95, %s96
      %p108 = scmp.eq.s32.totalorder %s23, 1
      %p109 = por %p107, %p108
      %p111 = scmp.ne.s32.totalorder %s96, %s110
      %p112 = scmp.eq.s32.totalorder %s23, 0
      %p113 = por %p111, %p112
      %s115 = sadd.s32 %s114, 1
      %p118 = scmp.eq.s32.totalorder %s17, 1
      %p119 = scmp.ne.s32.totalorder %s114, %s116
      %p120 = scmp.eq.s32.totalorder %s17, 0
      %p121 = por %p119, %p120
      %p122 = scmp.ne.s32.totalorder %s114, %s116
      %p123 = scmp.eq.s32.totalorder %s22, 1
      %p124 = por %p122, %p123
      %p125 = scmp.ne.s32.totalorder %s116, %s117
      %p126 = scmp.eq.s32.totalorder %s22, 0
      %p127 = por %p125, %p126
      %p128 = scmp.ne.s32.totalorder %s116, %s117
      %p129 = scmp.eq.s32.totalorder %s23, 1
      %p130 = por %p128, %p129
      %p132 = scmp.ne.s32.totalorder %s117, %s131
      %p133 = scmp.eq.s32.totalorder %s23, 0
      %p134 = por %p132, %p133
      %s136 = sadd.s32 %s135, 1
      %p139 = scmp.eq.s32.totalorder %s17, 1
      %p140 = scmp.ne.s32.totalorder %s135, %s137
      %p141 = scmp.eq.s32.totalorder %s17, 0
      %p142 = por %p140, %p141
      %p143 = scmp.ne.s32.totalorder %s135, %s137
      %p144 = scmp.eq.s32.totalorder %s22, 1
      %p145 = por %p143, %p144
      %p146 = scmp.ne.s32.totalorder %s137, %s138
      %p147 = scmp.eq.s32.totalorder %s22, 0
      %p148 = por %p146, %p147
      %p149 = scmp.ne.s32.totalorder %s137, %s138
      %p150 = scmp.eq.s32.totalorder %s23, 1
      %p151 = por %p149, %p150
      %p153 = scmp.ne.s32.totalorder %s138, %s152
      %p154 = scmp.eq.s32.totalorder %s23, 0
      %p155 = por %p153, %p154
      %s156 = ssub.s32 %s17, %s24
      %p157 = scmp.eq.s32.totalorder %s156, 0
      %s159 = sadd.s32 %s158, 1
      %s160 = scalar_select %p157, %s158, %s159
      %p163 = pneg %p157
      %p164 = scmp.eq.s32.totalorder %s17, 1
      %p165 = por %p163, %p164
      %p166 = scmp.ne.s32.totalorder %s158, %s161
      %p167 = scmp.eq.s32.totalorder %s17, 0
      %p168 = por %p166, %p167
      %p169 = scmp.ne.s32.totalorder %s158, %s161
      %p170 = scmp.eq.s32.totalorder %s22, 1
      %p171 = por %p169, %p170
      %p172 = scmp.ne.s32.totalorder %s161, %s162
      %p173 = scmp.eq.s32.totalorder %s22, 0
      %p174 = por %p172, %p173
      %p175 = scmp.ne.s32.totalorder %s161, %s162
      %p176 = scmp.eq.s32.totalorder %s23, 1
      %p177 = por %p175, %p176
      %p179 = scmp.ne.s32.totalorder %s162, %s178
      %p180 = scmp.eq.s32.totalorder %s23, 0
      %p181 = por %p179, %p180
      %p182 = scmp.le.s32.totalorder 1, %s17
      %p183 = scmp.lt.s32.totalorder %s17, 3
      %p184 = pnand %p182, %p183
      %p185 = pneg %p184
      // Predicated region
      $region9: #{tpu_custom_call.1} parent=5 // pred_check
        _
      $region10: #{tpu_custom_call.1} parent=5 // pred_check_branch
        %187 = sbr.rel (%p184) target = $region12
      $region11: #{tpu_custom_call.1} parent=5 // pred_region
        %s188 = ssub.s32 %s17, 1
        // Predicated region
        $region13: #{tpu_custom_call.1} parent=11 // pred_check
          %p189 = pneg %p64
        $region14: #{tpu_custom_call.1} parent=11 // pred_check_branch
          %191 = sbr.rel (%p189) target = $region16
        $region15: #{tpu_custom_call.1} parent=11 // pred_region
          _
        $region16: #{tpu_custom_call.1} parent=11 // pred_fallthru
          _
        // Predicated region
        $region17: #{tpu_custom_call.1} parent=11 // pred_check
          %p192 = pneg %p85
        $region18: #{tpu_custom_call.1} parent=11 // pred_check_branch
          %194 = sbr.rel (%p192) target = $region20
        $region19: #{tpu_custom_call.1} parent=11 // pred_region
          %s196 = ssub.s32 2048, 2048
          %197 = vsyncadd [#allocation3], %s196
          %s198 = sshll.u32 [#allocation2], 4
          %s199 = int_to_ptr.vmem [resolvable:$true] %s198
          %204 = dma.hbm_to_vmem [thread:$0]  %s2, 2048, %s199, [#allocation3], 64, 64, 4
        $region20: #{tpu_custom_call.1} parent=11 // pred_fallthru
          _
        // Predicated region
        $region21: #{tpu_custom_call.1} parent=11 // pred_check
          %p205 = pneg %p106
        $region22: #{tpu_custom_call.1} parent=11 // pred_check_branch
          %207 = sbr.rel (%p205) target = $region24
        $region23: #{tpu_custom_call.1} parent=11 // pred_region
          _
        $region24: #{tpu_custom_call.1} parent=11 // pred_fallthru
          _
        // Predicated region
        $region25: #{tpu_custom_call.1} parent=11 // pred_check
          %p208 = pneg %p127
        $region26: #{tpu_custom_call.1} parent=11 // pred_check_branch
          %210 = sbr.rel (%p208) target = $region28
        $region27: #{tpu_custom_call.1} parent=11 // pred_region
          %s212 = ssub.s32 1024, 1024
          %213 = vsyncadd [#allocation6], %s212
          %s214 = sshll.u32 [#allocation5], 4
          %s215 = int_to_ptr.vmem [resolvable:$true] %s214
          %220 = dma.hbm_to_vmem [thread:$0]  %s4, 1024, %s215, [#allocation6], 64, 64, 4
        $region28: #{tpu_custom_call.1} parent=11 // pred_fallthru
          _
        // Predicated region
        $region29: #{tpu_custom_call.1} parent=11 // pred_check
          %p221 = pneg %p148
        $region30: #{tpu_custom_call.1} parent=11 // pred_check_branch
          %223 = sbr.rel (%p221) target = $region32
        $region31: #{tpu_custom_call.1} parent=11 // pred_region
          _
        $region32: #{tpu_custom_call.1} parent=11 // pred_fallthru
          _
      $region12: #{tpu_custom_call.1} parent=5 // pred_fallthru
        _
      %p224 = scmp.lt.s32.totalorder %s17, 2
      // Predicated region
      $region33: #{tpu_custom_call.1} parent=5 // pred_check
        %p225 = pneg %p224
      $region34: #{tpu_custom_call.1} parent=5 // pred_check_branch
        %227 = sbr.rel (%p225) target = $region36
      $region35: #{tpu_custom_call.1} parent=5 // pred_region
        // Predicated region
        $region37: #{tpu_custom_call.1} parent=35 // pred_check
          %p228 = pneg %p37
        $region38: #{tpu_custom_call.1} parent=35 // pred_check_branch
          %230 = sbr.rel (%p228) target = $region40
        $region39: #{tpu_custom_call.1} parent=35 // pred_region
          %s231 = smul.u32 2, %s17
          %p232 = scmp.lt.s32.totalorder %s231, 3
          %s233 = scalar_select %p232, %s231, 3
          %s234 = smul.addr %s233, 8
          %s235 = scalar_lea.vmem %s0, %s234
          %s236 = smul.u32 2, %s17
        $region40: #{tpu_custom_call.1} parent=35 // pred_fallthru
          _
      $region36: #{tpu_custom_call.1} parent=5 // pred_fallthru
        _
      %p237 = scmp.le.s32.totalorder 1, %s17
      %p238 = scmp.lt.s32.totalorder %s17, 3
      %p239 = pnand %p237, %p238
      %p240 = pneg %p239
      // Predicated region
      $region41: #{tpu_custom_call.1} parent=5 // pred_check
        _
      $region42: #{tpu_custom_call.1} parent=5 // pred_check_branch
        %242 = sbr.rel (%p239) target = $region44
      $region43: #{tpu_custom_call.1} parent=5 // pred_region
        %s243 = ssub.s32 %s17, 1
        // Predicated region
        $region45: #{tpu_custom_call.1} parent=43 // pred_check
          %p244 = pneg %p85
        $region46: #{tpu_custom_call.1} parent=43 // pred_check_branch
          %246 = sbr.rel (%p244) target = $region48
        $region47: #{tpu_custom_call.1} parent=43 // pred_region
          %247 = dma.done [#allocation3], 2048
        $region48: #{tpu_custom_call.1} parent=43 // pred_fallthru
          _
        // Predicated region
        $region49: #{tpu_custom_call.1} parent=43 // pred_check
          %p248 = pneg %p127
        $region50: #{tpu_custom_call.1} parent=43 // pred_check_branch
          %250 = sbr.rel (%p248) target = $region52
        $region51: #{tpu_custom_call.1} parent=43 // pred_region
          %251 = dma.done [#allocation6], 1024
        $region52: #{tpu_custom_call.1} parent=43 // pred_fallthru
          _
        %s252 = smul.u32 2, %s22
        %p253 = scmp.lt.s32.totalorder %s252, 3
        %s254 = scalar_select %p253, %s252, 3
        %s255 = smul.addr %s254, 8
        %s256 = scalar_lea.vmem %s0, %s255
        %p257 = pneg %p43
        %p258 = pneg %p40
        %p259 = pneg %p64
        %p260 = pneg %p61
        %p261 = pneg %p85
        %p262 = pneg %p82
        %p263 = pneg %p106
        %p264 = pneg %p103
        %p265 = pneg %p127
        %p266 = pneg %p124
        %p267 = pneg %p148
        %p268 = pneg %p145
        %p269 = pneg %p174
        %p270 = pneg %p171
        %s271 = sand.u32 %s161, 1
        %s272 = scalar_lea.sflag [#allocation4], %s271
        %s273 = sand.u32 %s161, 1
        %s274 = smul.addr %s273, 16
        %s275 = scalar_lea.vmem [#allocation7], %s274
        %s276 = smul.u32 2, %s22
        %p277 = scmp.lt.s32.totalorder %s276, 3
        %s278 = scalar_select %p277, %s276, 3
        %s279 = smul.addr %s278, 8
        %s280 = scalar_lea.vmem %s0, %s279
        %s281 = smul.u32 2, %s22
        %s282 = smul.u32 2, %s22
        %v284 = vld [vmem:[%s280] sm:$0xff]
        %v285 = vld [vmem:[%s280 + $0x8] sm:$0xff]
        %v286 = vld [vmem:[%s1] sm:$0x3]
        %v287 = vlaneseq
        %v288 = vshrl.u32 %v287, 7
        %v289 = vsub.s32 0, %v288
        %v290 = vrot.slane %v286, %v289
        %v291 = vlaneseq
        %v292 = vshrl.u32 %v291, 7
        %v293 = vsub.s32 1, %v292
        %v294 = vrot.slane %v286, %v293
        %295 = vset.pattern.permute.xlu0 0
        %296 = vperm.xlu0 %295, %v284
        %v297 = vpop.permute.xlu0 %296
        %298 = vset.pattern.permute.xlu0 0
        %299 = vperm.xlu0 %298, %v285
        %v300 = vpop.permute.xlu0 %299
        %vm301 = vcmp.eq.s32.totalorder %v290, %v297
        %vm302 = vcmp.eq.s32.totalorder %v294, %v297
        %vm303 = vcmp.eq.s32.totalorder %v290, %v300
        %vm304 = vcmp.eq.s32.totalorder %v294, %v300
        %305 = vset.pattern.permute.xlu0 1
        %306 = vperm.xlu0 %305, %v284
        %v307 = vpop.permute.xlu0 %306
        %308 = vset.pattern.permute.xlu0 1
        %309 = vperm.xlu0 %308, %v285
        %v310 = vpop.permute.xlu0 %309
        %vm311 = vcmp.eq.s32.totalorder %v290, %v307
        %vm312 = vcmp.eq.s32.totalorder %v294, %v307
        %vm313 = vcmp.eq.s32.totalorder %v290, %v310
        %vm314 = vcmp.eq.s32.totalorder %v294, %v310
        %vm315 = vmor %vm301, %vm311
        %vm316 = vmor %vm302, %vm312
        %vm317 = vmor %vm303, %vm313
        %vm318 = vmor %vm304, %vm314
        %319 = vset.pattern.permute.xlu0 2
        %320 = vperm.xlu0 %319, %v284
        %v321 = vpop.permute.xlu0 %320
        %322 = vset.pattern.permute.xlu0 2
        %323 = vperm.xlu0 %322, %v285
        %v324 = vpop.permute.xlu0 %323
        %vm325 = vcmp.eq.s32.totalorder %v290, %v321
        %vm326 = vcmp.eq.s32.totalorder %v294, %v321
        %vm327 = vcmp.eq.s32.totalorder %v290, %v324
        %vm328 = vcmp.eq.s32.totalorder %v294, %v324
        %vm329 = vmor %vm315, %vm325
        %vm330 = vmor %vm316, %vm326
        %vm331 = vmor %vm317, %vm327
        %vm332 = vmor %vm318, %vm328
        %333 = vset.pattern.permute.xlu0 3
        %334 = vperm.xlu0 %333, %v284
        %v335 = vpop.permute.xlu0 %334
        %336 = vset.pattern.permute.xlu0 3
        %337 = vperm.xlu0 %336, %v285
        %v338 = vpop.permute.xlu0 %337
        %vm339 = vcmp.eq.s32.totalorder %v290, %v335
        %vm340 = vcmp.eq.s32.totalorder %v294, %v335
        %vm341 = vcmp.eq.s32.totalorder %v290, %v338
        %vm342 = vcmp.eq.s32.totalorder %v294, %v338
        %vm343 = vmor %vm329, %vm339
        %vm344 = vmor %vm330, %vm340
        %vm345 = vmor %vm331, %vm341
        %vm346 = vmor %vm332, %vm342
        %v347 = vsel %vm343, 1, 0
        %v348 = vsel %vm344, 1, 0
        %v349 = vsel %vm345, 1, 0
        %v350 = vsel %vm346, 1, 0
        %v351 = vcvt.s32.f32 %v347
        %v352 = vcvt.s32.f32 %v348
        %v353 = vcvt.s32.f32 %v349
        %v354 = vcvt.s32.f32 %v350
        %v355 = vpack.c.bf16 %v353, %v351
        %v356 = vpack.c.bf16 %v354, %v352
        %v357 = vld [vmem:[#allocation2] sm:$0xf]
        %v358 = vld [vmem:[#allocation2 + $0x4] sm:$0xf]
        %v359 = vld [vmem:[#allocation2 + $0x8] sm:$0xf]
        %v360 = vld [vmem:[#allocation2 + $0xc] sm:$0xf]
        %v361 = vld [vmem:[#allocation2 + $0x10] sm:$0xf]
        %v362 = vld [vmem:[#allocation2 + $0x14] sm:$0xf]
        %v363 = vld [vmem:[#allocation2 + $0x18] sm:$0xf]
        %v364 = vld [vmem:[#allocation2 + $0x1c] sm:$0xf]
        %v365 = vld [vmem:[#allocation2 + $0x20] sm:$0xf]
        %v366 = vld [vmem:[#allocation2 + $0x24] sm:$0xf]
        %v367 = vld [vmem:[#allocation2 + $0x28] sm:$0xf]
        %v368 = vld [vmem:[#allocation2 + $0x2c] sm:$0xf]
        %v369 = vld [vmem:[#allocation2 + $0x30] sm:$0xf]
        %v370 = vld [vmem:[#allocation2 + $0x34] sm:$0xf]
        %v371 = vld [vmem:[#allocation2 + $0x38] sm:$0xf]
        %v372 = vld [vmem:[#allocation2 + $0x3c] sm:$0xf]
        %v373 = vld [vmem:[#allocation2 + $0x40] sm:$0xf]
        %v374 = vld [vmem:[#allocation2 + $0x44] sm:$0xf]
        %v375 = vld [vmem:[#allocation2 + $0x48] sm:$0xf]
        %v376 = vld [vmem:[#allocation2 + $0x4c] sm:$0xf]
        %v377 = vld [vmem:[#allocation2 + $0x50] sm:$0xf]
        %v378 = vld [vmem:[#allocation2 + $0x54] sm:$0xf]
        %v379 = vld [vmem:[#allocation2 + $0x58] sm:$0xf]
        %v380 = vld [vmem:[#allocation2 + $0x5c] sm:$0xf]
        %v381 = vld [vmem:[#allocation2 + $0x60] sm:$0xf]
        %v382 = vld [vmem:[#allocation2 + $0x64] sm:$0xf]
        %v383 = vld [vmem:[#allocation2 + $0x68] sm:$0xf]
        %v384 = vld [vmem:[#allocation2 + $0x6c] sm:$0xf]
        %v385 = vld [vmem:[#allocation2 + $0x70] sm:$0xf]
        %v386 = vld [vmem:[#allocation2 + $0x74] sm:$0xf]
        %v387 = vld [vmem:[#allocation2 + $0x78] sm:$0xf]
        %v388 = vld [vmem:[#allocation2 + $0x7c] sm:$0xf]
        %v389 = vld [vmem:[%s3] sm:$0x1]
        %v391 = vlaneseq
        %v392 = vshrl.u32 %v391, 7
        %v393 = vsub.s32 0, %v392
        %v394 = vrot.slane %v389, %v393
        %v428 = vunpack.c.l.b16 %v357
        %v429 = vunpack.c.l.b16 %v358
        %v430 = vunpack.c.l.b16 %v359
        %v431 = vunpack.c.l.b16 %v360
        %v432 = vunpack.c.l.b16 %v361
        %v433 = vunpack.c.l.b16 %v362
        %v434 = vunpack.c.l.b16 %v363
        %v435 = vunpack.c.l.b16 %v364
        %v436 = vunpack.c.l.b16 %v365
        %v437 = vunpack.c.l.b16 %v366
        %v438 = vunpack.c.l.b16 %v367
        %v439 = vunpack.c.l.b16 %v368
        %v440 = vunpack.c.l.b16 %v369
        %v441 = vunpack.c.l.b16 %v370
        %v442 = vunpack.c.l.b16 %v371
        %v443 = vunpack.c.l.b16 %v372
        %v444 = vunpack.c.l.b16 %v373
        %v445 = vunpack.c.l.b16 %v374
        %v446 = vunpack.c.l.b16 %v375
        %v447 = vunpack.c.l.b16 %v376
        %v448 = vunpack.c.l.b16 %v377
        %v449 = vunpack.c.l.b16 %v378
        %v450 = vunpack.c.l.b16 %v379
        %v451 = vunpack.c.l.b16 %v380
        %v452 = vunpack.c.l.b16 %v381
        %v453 = vunpack.c.l.b16 %v382
        %v454 = vunpack.c.l.b16 %v383
        %v455 = vunpack.c.l.b16 %v384
        %v456 = vunpack.c.l.b16 %v385
        %v457 = vunpack.c.l.b16 %v386
        %v458 = vunpack.c.l.b16 %v387
        %v459 = vunpack.c.l.b16 %v388
        %v460 = vpack.c.b16 %v429, %v428
        %v461 = vpack.c.b16 %v431, %v430
        %v462 = vpack.c.b16 %v433, %v432
        %v463 = vpack.c.b16 %v435, %v434
        %v464 = vpack.c.b16 %v437, %v436
        %v465 = vpack.c.b16 %v439, %v438
        %v466 = vpack.c.b16 %v441, %v440
        %v467 = vpack.c.b16 %v443, %v442
        %v468 = vpack.c.b16 %v445, %v444
        %v469 = vpack.c.b16 %v447, %v446
        %v470 = vpack.c.b16 %v449, %v448
        %v471 = vpack.c.b16 %v451, %v450
        %v472 = vpack.c.b16 %v453, %v452
        %v473 = vpack.c.b16 %v455, %v454
        %v474 = vpack.c.b16 %v457, %v456
        %v475 = vpack.c.b16 %v459, %v458
        %492 = vmatprep.subr.bf16.mxu0 0
        %493 = vmatpush1.bf16.msra.mxu0 %v460
        %494 = vmatprep.subr.bf16.mxu0 0
        %495 = vmatpush1.bf16.msra.mxu0 %v461
        %496 = vmatprep.subr.bf16.mxu0 0
        %497 = vmatpush1.bf16.msra.mxu0 %v462
        %498 = vmatprep.subr.bf16.mxu0 0
        %499 = vmatpush1.bf16.msra.mxu0 %v463
        %500 = vmatprep.subr.bf16.mxu0 0
        %501 = vmatpush1.bf16.msra.mxu0 %v464
        %502 = vmatprep.subr.bf16.mxu0 0
        %503 = vmatpush1.bf16.msra.mxu0 %v465
        %504 = vmatprep.subr.bf16.mxu0 0
        %505 = vmatpush1.bf16.msra.mxu0 %v466
        %506 = vmatprep.subr.bf16.mxu0 0
        %507 = vmatpush1.bf16.msra.mxu0 %v467
        %508 = vmatprep.subr.bf16.mxu0 0
        %509 = vmatpush1.bf16.msra.mxu0 %v468
        %510 = vmatprep.subr.bf16.mxu0 0
        %511 = vmatpush1.bf16.msra.mxu0 %v469
        %512 = vmatprep.subr.bf16.mxu0 0
        %513 = vmatpush1.bf16.msra.mxu0 %v470
        %514 = vmatprep.subr.bf16.mxu0 0
        %515 = vmatpush1.bf16.msra.mxu0 %v471
        %516 = vmatprep.subr.bf16.mxu0 0
        %517 = vmatpush1.bf16.msra.mxu0 %v472
        %518 = vmatprep.subr.bf16.mxu0 0
        %519 = vmatpush1.bf16.msra.mxu0 %v473
        %520 = vmatprep.subr.bf16.mxu0 0
        %521 = vmatpush1.bf16.msra.mxu0 %v474
        %522 = vmatprep.subr.bf16.mxu0 0
        %523 = vmatpush1.bf16.msra.mxu0 %v475
        %524 = vmatprep.mubr.bf16.mxu0 %v356
        %525 = vmatmul.mubr.bf16.gmra.mrb[0].mxu0 %v355
        %v526 = vpop.f32.mrb[0].mxu0
        %v527 = vadd.f32 %v394, %v526
        %v528 = vpop.f32.mrb[0].mxu0
        %v529 = vpop.f32.mrb[0].mxu0
        %v530 = vadd.f32 %v394, %v529
        %v531 = vpop.f32.mrb[0].mxu0
        %532 = vdwg.mxu0
        %v533 = vmax.f32 %v527, 0.0
        %v534 = vmax.f32 %v530, 0.0
        %v535 = vpack.c.bf16 %v534, %v533
        %v536 = vld [vmem:[#allocation5] sm:$0xf]
        %v537 = vld [vmem:[#allocation5 + $0x4] sm:$0xf]
        %v538 = vld [vmem:[#allocation5 + $0x8] sm:$0xf]
        %v539 = vld [vmem:[#allocation5 + $0xc] sm:$0xf]
        %v540 = vld [vmem:[#allocation5 + $0x10] sm:$0xf]
        %v541 = vld [vmem:[#allocation5 + $0x14] sm:$0xf]
        %v542 = vld [vmem:[#allocation5 + $0x18] sm:$0xf]
        %v543 = vld [vmem:[#allocation5 + $0x1c] sm:$0xf]
        %v544 = vld [vmem:[#allocation5 + $0x20] sm:$0xf]
        %v545 = vld [vmem:[#allocation5 + $0x24] sm:$0xf]
        %v546 = vld [vmem:[#allocation5 + $0x28] sm:$0xf]
        %v547 = vld [vmem:[#allocation5 + $0x2c] sm:$0xf]
        %v548 = vld [vmem:[#allocation5 + $0x30] sm:$0xf]
        %v549 = vld [vmem:[#allocation5 + $0x34] sm:$0xf]
        %v550 = vld [vmem:[#allocation5 + $0x38] sm:$0xf]
        %v551 = vld [vmem:[#allocation5 + $0x3c] sm:$0xf]
        %v552 = vld [vmem:[%s5] sm:$0x1]
        %v554 = vlaneseq
        %v555 = vshrl.u32 %v554, 7
        %v556 = vsub.s32 0, %v555
        %v557 = vrot.slane %v552, %v556
        %v575 = vunpack.c.l.b16 %v536
        %v576 = vunpack.c.l.b16 %v537
        %v577 = vunpack.c.l.b16 %v538
        %v578 = vunpack.c.l.b16 %v539
        %v579 = vunpack.c.l.b16 %v540
        %v580 = vunpack.c.l.b16 %v541
        %v581 = vunpack.c.l.b16 %v542
        %v582 = vunpack.c.l.b16 %v543
        %v583 = vunpack.c.l.b16 %v544
        %v584 = vunpack.c.l.b16 %v545
        %v585 = vunpack.c.l.b16 %v546
        %v586 = vunpack.c.l.b16 %v547
        %v587 = vunpack.c.l.b16 %v548
        %v588 = vunpack.c.l.b16 %v549
        %v589 = vunpack.c.l.b16 %v550
        %v590 = vunpack.c.l.b16 %v551
        %v591 = vpack.c.b16 %v576, %v575
        %v592 = vpack.c.b16 %v578, %v577
        %v593 = vpack.c.b16 %v580, %v579
        %v594 = vpack.c.b16 %v582, %v581
        %v595 = vpack.c.b16 %v584, %v583
        %v596 = vpack.c.b16 %v586, %v585
        %v597 = vpack.c.b16 %v588, %v587
        %v598 = vpack.c.b16 %v590, %v589
        %607 = vmatprep.subr.bf16.mxu0 0
        %608 = vmatpush1.bf16.msra.mxu0 %v591
        %609 = vmatprep.subr.bf16.mxu0 0
        %610 = vmatpush1.bf16.msra.mxu0 %v592
        %611 = vmatprep.subr.bf16.mxu0 0
        %612 = vmatpush1.bf16.msra.mxu0 %v593
        %613 = vmatprep.subr.bf16.mxu0 0
        %614 = vmatpush1.bf16.msra.mxu0 %v594
        %615 = vmatprep.subr.bf16.mxu0 0
        %616 = vmatpush1.bf16.msra.mxu0 %v595
        %617 = vmatprep.subr.bf16.mxu0 0
        %618 = vmatpush1.bf16.msra.mxu0 %v596
        %619 = vmatprep.subr.bf16.mxu0 0
        %620 = vmatpush1.bf16.msra.mxu0 %v597
        %621 = vmatprep.subr.bf16.mxu0 0
        %622 = vmatpush1.bf16.msra.mxu0 %v598
        %623 = vmatprep.subr.bf16.mxu0 0
        %624 = vmatpush1.bf16.msra.mxu0 0
        %625 = vmatprep.subr.bf16.mxu0 0
        %626 = vmatpush1.bf16.msra.mxu0 0
        %627 = vmatprep.subr.bf16.mxu0 0
        %628 = vmatpush1.bf16.msra.mxu0 0
        %629 = vmatprep.subr.bf16.mxu0 0
        %630 = vmatpush1.bf16.msra.mxu0 0
        %631 = vmatprep.subr.bf16.mxu0 0
        %632 = vmatpush1.bf16.msra.mxu0 0
        %633 = vmatprep.subr.bf16.mxu0 0
        %634 = vmatpush1.bf16.msra.mxu0 0
        %635 = vmatprep.subr.bf16.mxu0 0
        %636 = vmatpush1.bf16.msra.mxu0 0
        %637 = vmatprep.subr.bf16.mxu0 0
        %638 = vmatpush1.bf16.msra.mxu0 0
        %639 = vmatprep.mubr.bf16.mxu0 0
        %640 = vmatmul.mubr.bf16.gmra.mrb[0].mxu0 %v535
        %v641 = vpop.f32.mrb[0].mxu0
        %v642 = vadd.f32 %v557, %v641
        %v643 = vpop.f32.mrb[0].mxu0
        %v644 = vpop.f32.mrb[0].mxu0
        %v645 = vadd.f32 %v557, %v644
        %v646 = vpop.f32.mrb[0].mxu0
        %647 = vdwg.mxu0
        %648 = vst [vmem:[%s275] sm:$0xff] %v642
        %649 = vst [vmem:[%s275 + $0x8] sm:$0xff] %v645
        %s650 = sand.u32 %s161, 1
        %s651 = scalar_lea.sflag [#allocation4], %s650
        %s652 = sand.u32 %s161, 1
        %s653 = smul.addr %s652, 16
        %s654 = scalar_lea.vmem [#allocation7], %s653
        // Predicated region
        $region53: #{tpu_custom_call.1} parent=43 // pred_check
          %p655 = pneg %p171
        $region54: #{tpu_custom_call.1} parent=43 // pred_check_branch
          %657 = sbr.rel (%p655) target = $region56
        $region55: #{tpu_custom_call.1} parent=43 // pred_region
          %s658 = smul.u32 2, %s22
          %s660 = ssub.s32 256, 256
          %661 = vsyncadd %s651, %s660
          %s662 = smul.addr %s658, 128
          %s663 = scalar_lea.hbm %s6, %s662
          %s664 = sshll.u32 %s654, 4
          %s665 = int_to_ptr.vmem [resolvable:$true] %s664
          %670 = dma.vmem_to_hbm [thread:$0]  %s665, 256, %s663, %s651, 128, 128, 8
        $region56: #{tpu_custom_call.1} parent=43 // pred_fallthru
          _
      $region44: #{tpu_custom_call.1} parent=5 // pred_fallthru
        _
      %p671 = scmp.le.s32.totalorder 2, %s17
      // Predicated region
      $region57: #{tpu_custom_call.1} parent=5 // pred_check
        %p672 = pneg %p671
      $region58: #{tpu_custom_call.1} parent=5 // pred_check_branch
        %674 = sbr.rel (%p672) target = $region60
      $region59: #{tpu_custom_call.1} parent=5 // pred_region
        %s675 = ssub.s32 %s17, 2
        // Predicated region
        $region61: #{tpu_custom_call.1} parent=59 // pred_check
          %p676 = pneg %p177
        $region62: #{tpu_custom_call.1} parent=59 // pred_check_branch
          %678 = sbr.rel (%p676) target = $region64
        $region63: #{tpu_custom_call.1} parent=59 // pred_region
          %s679 = sand.u32 %s162, 1
          %s680 = scalar_lea.sflag [#allocation4], %s679
          %s681 = sand.u32 %s162, 1
          %s682 = smul.addr %s681, 16
          %s683 = scalar_lea.vmem [#allocation7], %s682
          %684 = dma.done %s680, 256
        $region64: #{tpu_custom_call.1} parent=59 // pred_fallthru
          _
      $region60: #{tpu_custom_call.1} parent=5 // pred_fallthru
        _
    $region6: #{tpu_custom_call.1} parent=1 // loop_footer
      %s21 = sadd.s32 1, %s17
    $region7: #{tpu_custom_call.1} parent=1 // loop_footer_branch
      %16 = sbr.rel target = $region3
    $region8: #{tpu_custom_call.1} parent=1 // loop_exit
      _
    %685 = vsyncpa [#allocation3], 1
    %s686 = scalar_lea.sflag [#allocation3], 1
    %687 = vsyncpa %s686, 1
    %688 = vsyncpa [#allocation6], 1
    %689 = vsyncpa [#allocation4], 1
    %s690 = scalar_lea.sflag [#allocation4], 1
    %691 = vsyncpa %s690, 1

</llo_original>
